<compile_context>
chip_gen: v6e
topology: v6e:2x2x1
jax: 0.10.0
libtpu: 0.0.40
codegen_flags: <defaults>
</compile_context>

<pallas_src>
import jax
import jax.numpy as jnp
from jax.experimental import pallas as pl
from jax.experimental.pallas import tpu as pltpu

_LANE = 128


def _round_up(n, m):
    return ((n + m - 1) // m) * m


def _mlp_kernel(x_ref,
                w1_ref, b1_ref,
                w2_ref, b2_ref,
                w3_ref, b3_ref,
                w4_ref, b4_ref,
                o_ref):
    """Fused 4-layer MLP (3 hidden ReLU layers + linear head) on one batch tile.

    Dropout in the PyTorch module has p=0.0 -> identity -> no-op here.
    """
    x = x_ref[...]
    h = jnp.dot(x, w1_ref[...], preferred_element_type=jnp.float32) + b1_ref[...]
    h = jnp.maximum(h, 0.0)
    h = jnp.dot(h, w2_ref[...], preferred_element_type=jnp.float32) + b2_ref[...]
    h = jnp.maximum(h, 0.0)
    h = jnp.dot(h, w3_ref[...], preferred_element_type=jnp.float32) + b3_ref[...]
    h = jnp.maximum(h, 0.0)
    out = jnp.dot(h, w4_ref[...], preferred_element_type=jnp.float32) + b4_ref[...]
    o_ref[...] = out.astype(o_ref.dtype)


def prepare_params(params):
    """One-time weight prep (hoisted out of the hot path).

    Zero-pads the hidden feature dims up to a multiple of 128 lanes so the
    intermediate activations are lane-dense.  Numerically exact (see header).
    Input and output feature dims are left untouched.
    """
    w1, b1 = params["w1"], params["b1"]
    w2, b2 = params["w2"], params["b2"]
    w3, b3 = params["w3"], params["b3"]
    w4, b4 = params["w4"], params["b4"]

    h1, h2, h3 = w1.shape[1], w2.shape[1], w3.shape[1]
    h1p = _round_up(max(h1, _LANE), _LANE)
    h2p = _round_up(max(h2, _LANE), _LANE)
    h3p = _round_up(max(h3, _LANE), _LANE)

    return {
        "w1": jnp.pad(w1, ((0, 0), (0, h1p - h1))),
        "b1": jnp.pad(b1, ((0, 0), (0, h1p - h1))),
        "w2": jnp.pad(w2, ((0, h1p - h1), (0, h2p - h2))),
        "b2": jnp.pad(b2, ((0, 0), (0, h2p - h2))),
        "w3": jnp.pad(w3, ((0, h2p - h2), (0, h3p - h3))),
        "b3": jnp.pad(b3, ((0, 0), (0, h3p - h3))),
        "w4": jnp.pad(w4, ((0, h3p - h3), (0, 0))),
        "b4": b4,
    }


def _run_pallas(xp, p, batch_tile, out_size, semantics, cost):
    Bp, in_size = xp.shape
    grid_len = Bp // batch_tile

    def full_spec(arr):
        # whole weight/bias array resident in VMEM, same block every grid step
        return pl.BlockSpec(arr.shape, lambda i: (0, 0))

    return pl.pallas_call(
        _mlp_kernel,
        out_shape=jax.ShapeDtypeStruct((Bp, out_size), xp.dtype),
        grid_spec=pl.GridSpec(
            grid=(grid_len,),
            in_specs=[
                pl.BlockSpec((batch_tile, in_size), lambda i: (i, 0)),
                full_spec(p["w1"]), full_spec(p["b1"]),
                full_spec(p["w2"]), full_spec(p["b2"]),
                full_spec(p["w3"]), full_spec(p["b3"]),
                full_spec(p["w4"]), full_spec(p["b4"]),
            ],
            # last block dim == full array dim -> legal without 128-lane pad
            out_specs=pl.BlockSpec((batch_tile, out_size), lambda i: (i, 0)),
        ),
        compiler_params=pltpu.CompilerParams(dimension_semantics=semantics),
        cost_estimate=cost,
    )(xp,
      p["w1"], p["b1"],
      p["w2"], p["b2"],
      p["w3"], p["b3"],
      p["w4"], p["b4"])


def objective_estimator_forward(x, prepared_params, *, batch_tile=None):
    """Run the fused MLP Pallas kernel.

    x:               (B, input_size) float32
    prepared_params: output of prepare_params() (weights (in, out), biases (1, out))
    """
    p = prepared_params
    B, in_size = x.shape
    out_size = p["w4"].shape[1]

    # Batch tiling: single step for small/medium batches (no pad, no extra
    # per-step overhead on single-TC chips), 2048-row tiles for large batches.
    if batch_tile is None:
        batch_tile = B if B <= 2048 else 2048
    if batch_tile >= B:
        batch_tile = B                      # one step; block == full array dims
    else:
        batch_tile = max(8, _round_up(batch_tile, 8))
    Bp = _round_up(B, batch_tile)
    # TODO(synk): for tile-unaligned huge batches, mask the tail tile in-kernel
    # instead of this jnp.pad pass (only triggers when B % batch_tile != 0).
    xp = x if Bp == B else jnp.pad(x, ((0, Bp - B), (0, 0)))
    grid_len = Bp // batch_tile

    # Advisory cost estimate so XLA schedules/overlaps the custom call well.
    h1, h2, h3 = p["w1"].shape[1], p["w2"].shape[1], p["w3"].shape[1]
    flops = 2 * B * (in_size * h1 + h1 * h2 + h2 * h3 + h3 * out_size)
    weight_bytes = sum(int(v.size) * v.dtype.itemsize for v in p.values())
    bytes_accessed = (int(xp.size) + Bp * out_size) * x.dtype.itemsize + weight_bytes
    cost = pl.CostEstimate(flops=flops, transcendentals=0,
                           bytes_accessed=bytes_accessed)

    # Megacore: on v7x shard the batch grid across both TensorCores.
    if grid_len == 1:
        semantics = ("arbitrary",)
    else:
        semantics = ("parallel",)
        try:
            if "v7" in jax.devices()[0].device_kind.lower() and grid_len % 2 == 0:
                semantics = (pltpu.CORE_PARALLEL,)
        except Exception:
            pass

    try:
        out = _run_pallas(xp, p, batch_tile, out_size, semantics, cost)
    except Exception:
        if semantics == ("arbitrary",):
            raise
        # conservative fallback if core-parallel lowering is unavailable
        out = _run_pallas(xp, p, batch_tile, out_size, ("arbitrary",), cost)

    return out[:B] if Bp != B else out


def init_params(key, input_size, hidden_sizes, output_size):
    """Deterministic synthetic parameter init (uniform, PyTorch-Linear-like scale)."""
    sizes = [input_size] + list(hidden_sizes) + [output_size]
    params = {}
    for li, (fan_in, fan_out) in enumerate(zip(sizes[:-1], sizes[1:]), start=1):
        key, kw, kb = jax.random.split(key, 3)
        bound = 1.0 / (fan_in ** 0.5)
        params[f"w{li}"] = jax.random.uniform(
            kw, (fan_in, fan_out), jnp.float32, -bound, bound)
        params[f"b{li}"] = jax.random.uniform(
            kb, (1, fan_out), jnp.float32, -bound, bound)
    return params


def reference_forward(x, params):
    """Plain-JAX reference for correctness check (uses the unpadded params)."""
    h = jnp.maximum(x @ params["w1"] + params["b1"], 0.0)
    h = jnp.maximum(h @ params["w2"] + params["b2"], 0.0)
    h = jnp.maximum(h @ params["w3"] + params["b3"], 0.0)
    return h @ params["w4"] + params["b4"]


if __name__ == "__main__":
    key = jax.random.PRNGKey(0)

    input_size = 16
    hidden_sizes = (32, 32, 32)
    output_size = 8

    kp, kx = jax.random.split(key)
    raw_params = init_params(kp, input_size, hidden_sizes, output_size)
    params = prepare_params(raw_params)   # one-time padding, out of hot path

    # small batch: single grid step, no padding anywhere
    batch = 32
    x = jax.random.normal(kx, (batch, input_size), jnp.float32)
    out = jax.block_until_ready(objective_estimator_forward(x, params))
    ref = reference_forward(x, raw_params)
    assert out.shape == (batch, output_size)
    assert jnp.allclose(out, ref, atol=1e-5, rtol=1e-5), "mismatch (small batch)"

    # uneven small batch: still a single step (block == full array dims)
    x2 = jax.random.normal(key, (batch + 5, input_size), jnp.float32)
    out2 = jax.block_until_ready(objective_estimator_forward(x2, params))
    assert out2.shape == (batch + 5, output_size)
    assert jnp.allclose(out2, reference_forward(x2, raw_params),
                        atol=1e-5, rtol=1e-5), "mismatch (uneven batch)"

    # large batch: exercises the multi-step / large-tile (2048-row) path
    x3 = jax.random.normal(jax.random.fold_in(key, 1), (4096, input_size), jnp.float32)
    out3 = jax.block_until_ready(objective_estimator_forward(x3, params))
    assert out3.shape == (4096, output_size)
    assert jnp.allclose(out3, reference_forward(x3, raw_params),
                        atol=1e-4, rtol=1e-5), "mismatch (large batch)"

    print("KERNEL_OK")
</pallas_src>

<mosaic_0001>
module attributes {stable_mosaic.version = 11 : i64} {
  func.func @_mlp_kernel(%arg0: i32, %arg1: memref<32x16xf32, #tpu.memory_space<vmem>>, %arg2: memref<16x128xf32, #tpu.memory_space<vmem>>, %arg3: memref<1x128xf32, #tpu.memory_space<vmem>>, %arg4: memref<128x128xf32, #tpu.memory_space<vmem>>, %arg5: memref<1x128xf32, #tpu.memory_space<vmem>>, %arg6: memref<128x128xf32, #tpu.memory_space<vmem>>, %arg7: memref<1x128xf32, #tpu.memory_space<vmem>>, %arg8: memref<128x8xf32, #tpu.memory_space<vmem>>, %arg9: memref<1x8xf32, #tpu.memory_space<vmem>>, %arg10: memref<32x8xf32, #tpu.memory_space<vmem>>) attributes {dimension_semantics = [#tpu.dimension_semantics<arbitrary>], iteration_bounds = array<i64: 1>, scalar_prefetch = 0 : i64, scratch_operands = 0 : i64, tpu.core_type = #tpu.core_type<tc>, window_params = [{transform_indices = @transform_0, window_bounds = array<i64: 32, 16>}, {pipeline_mode = #tpu.pipeline_mode<synchronous>, transform_indices = @transform_1, window_bounds = array<i64: 16, 128>}, {pipeline_mode = #tpu.pipeline_mode<synchronous>, transform_indices = @transform_2, window_bounds = array<i64: 1, 128>}, {pipeline_mode = #tpu.pipeline_mode<synchronous>, transform_indices = @transform_3, window_bounds = array<i64: 128, 128>}, {pipeline_mode = #tpu.pipeline_mode<synchronous>, transform_indices = @transform_4, window_bounds = array<i64: 1, 128>}, {pipeline_mode = #tpu.pipeline_mode<synchronous>, transform_indices = @transform_5, window_bounds = array<i64: 128, 128>}, {pipeline_mode = #tpu.pipeline_mode<synchronous>, transform_indices = @transform_6, window_bounds = array<i64: 1, 128>}, {pipeline_mode = #tpu.pipeline_mode<synchronous>, transform_indices = @transform_7, window_bounds = array<i64: 128, 8>}, {pipeline_mode = #tpu.pipeline_mode<synchronous>, transform_indices = @transform_8, window_bounds = array<i64: 1, 8>}, {transform_indices = @transform_9, window_bounds = array<i64: 32, 8>}]} {
    %c0 = arith.constant 0 : index
    %c0_0 = arith.constant 0 : index
    %0 = vector.load %arg1[%c0, %c0_0] : memref<32x16xf32, #tpu.memory_space<vmem>>, vector<32x16xf32>
    %c0_1 = arith.constant 0 : index
    %c0_2 = arith.constant 0 : index
    %1 = vector.load %arg2[%c0_1, %c0_2] : memref<16x128xf32, #tpu.memory_space<vmem>>, vector<16x128xf32>
    %cst = arith.constant dense<0.000000e+00> : vector<32x128xf32>
    %2 = tpu.matmul %0, %1, %cst {dimension_numbers = #tpu.dot_dimension_numbers<[1], [0], [0], [1], [0, 0, 1, 1], [], []>} : vector<32x16xf32>, vector<16x128xf32>, vector<32x128xf32> -> vector<32x128xf32>
    %c0_3 = arith.constant 0 : index
    %c0_4 = arith.constant 0 : index
    %3 = vector.load %arg3[%c0_3, %c0_4] : memref<1x128xf32, #tpu.memory_space<vmem>>, vector<1x128xf32>
    %4 = vector.broadcast %3 : vector<1x128xf32> to vector<32x128xf32>
    %5 = arith.addf %2, %4 : vector<32x128xf32>
    %cst_5 = arith.constant 0.000000e+00 : f32
    %6 = vector.broadcast %cst_5 : f32 to vector<32x128xf32>
    %7 = arith.maximumf %5, %6 : vector<32x128xf32>
    %c0_6 = arith.constant 0 : index
    %c0_7 = arith.constant 0 : index
    %8 = vector.load %arg4[%c0_6, %c0_7] : memref<128x128xf32, #tpu.memory_space<vmem>>, vector<128x128xf32>
    %cst_8 = arith.constant dense<0.000000e+00> : vector<32x128xf32>
    %9 = tpu.matmul %7, %8, %cst_8 {dimension_numbers = #tpu.dot_dimension_numbers<[1], [0], [0], [1], [0, 0, 1, 1], [], []>} : vector<32x128xf32>, vector<128x128xf32>, vector<32x128xf32> -> vector<32x128xf32>
    %c0_9 = arith.constant 0 : index
    %c0_10 = arith.constant 0 : index
    %10 = vector.load %arg5[%c0_9, %c0_10] : memref<1x128xf32, #tpu.memory_space<vmem>>, vector<1x128xf32>
    %11 = vector.broadcast %10 : vector<1x128xf32> to vector<32x128xf32>
    %12 = arith.addf %9, %11 : vector<32x128xf32>
    %cst_11 = arith.constant 0.000000e+00 : f32
    %13 = vector.broadcast %cst_11 : f32 to vector<32x128xf32>
    %14 = arith.maximumf %12, %13 : vector<32x128xf32>
    %c0_12 = arith.constant 0 : index
    %c0_13 = arith.constant 0 : index
    %15 = vector.load %arg6[%c0_12, %c0_13] : memref<128x128xf32, #tpu.memory_space<vmem>>, vector<128x128xf32>
    %cst_14 = arith.constant dense<0.000000e+00> : vector<32x128xf32>
    %16 = tpu.matmul %14, %15, %cst_14 {dimension_numbers = #tpu.dot_dimension_numbers<[1], [0], [0], [1], [0, 0, 1, 1], [], []>} : vector<32x128xf32>, vector<128x128xf32>, vector<32x128xf32> -> vector<32x128xf32>
    %c0_15 = arith.constant 0 : index
    %c0_16 = arith.constant 0 : index
    %17 = vector.load %arg7[%c0_15, %c0_16] : memref<1x128xf32, #tpu.memory_space<vmem>>, vector<1x128xf32>
    %18 = vector.broadcast %17 : vector<1x128xf32> to vector<32x128xf32>
    %19 = arith.addf %16, %18 : vector<32x128xf32>
    %cst_17 = arith.constant 0.000000e+00 : f32
    %20 = vector.broadcast %cst_17 : f32 to vector<32x128xf32>
    %21 = arith.maximumf %19, %20 : vector<32x128xf32>
    %c0_18 = arith.constant 0 : index
    %c0_19 = arith.constant 0 : index
    %22 = vector.load %arg8[%c0_18, %c0_19] : memref<128x8xf32, #tpu.memory_space<vmem>>, vector<128x8xf32>
    %cst_20 = arith.constant dense<0.000000e+00> : vector<32x8xf32>
    %23 = tpu.matmul %21, %22, %cst_20 {dimension_numbers = #tpu.dot_dimension_numbers<[1], [0], [0], [1], [0, 0, 1, 1], [], []>} : vector<32x128xf32>, vector<128x8xf32>, vector<32x8xf32> -> vector<32x8xf32>
    %c0_21 = arith.constant 0 : index
    %c0_22 = arith.constant 0 : index
    %24 = vector.load %arg9[%c0_21, %c0_22] : memref<1x8xf32, #tpu.memory_space<vmem>>, vector<1x8xf32>
    %25 = vector.broadcast %24 : vector<1x8xf32> to vector<32x8xf32>
    %26 = arith.addf %23, %25 : vector<32x8xf32>
    %c0_23 = arith.constant 0 : index
    %c0_24 = arith.constant 0 : index
    %27 = vector.load %arg10[%c0_23, %c0_24] : memref<32x8xf32, #tpu.memory_space<vmem>>, vector<32x8xf32>
    tpu.vector_store %arg10[%c0_23, %c0_24], %26 {strides = array<i32>} : memref<32x8xf32, #tpu.memory_space<vmem>>, vector<32x8xf32>,
    return
  }
  func.func @transform_0(%arg0: i32) -> (i32, i32) {
    %c0_i32 = arith.constant 0 : i32
    %c0_i32_0 = arith.constant 0 : i32
    return %arg0, %c0_i32 : i32, i32
  }
  func.func @transform_1(%arg0: i32) -> (i32, i32) {
    %c0_i32 = arith.constant 0 : i32
    %c0_i32_0 = arith.constant 0 : i32
    %c0_i32_1 = arith.constant 0 : i32
    return %c0_i32, %c0_i32_0 : i32, i32
  }
  func.func @transform_2(%arg0: i32) -> (i32, i32) {
    %c0_i32 = arith.constant 0 : i32
    %c0_i32_0 = arith.constant 0 : i32
    %c0_i32_1 = arith.constant 0 : i32
    return %c0_i32, %c0_i32_0 : i32, i32
  }
  func.func @transform_3(%arg0: i32) -> (i32, i32) {
    %c0_i32 = arith.constant 0 : i32
    %c0_i32_0 = arith.constant 0 : i32
    %c0_i32_1 = arith.constant 0 : i32
    return %c0_i32, %c0_i32_0 : i32, i32
  }
  func.func @transform_4(%arg0: i32) -> (i32, i32) {
    %c0_i32 = arith.constant 0 : i32
    %c0_i32_0 = arith.constant 0 : i32
    %c0_i32_1 = arith.constant 0 : i32
    return %c0_i32, %c0_i32_0 : i32, i32
  }
  func.func @transform_5(%arg0: i32) -> (i32, i32) {
    %c0_i32 = arith.constant 0 : i32
    %c0_i32_0 = arith.constant 0 : i32
    %c0_i32_1 = arith.constant 0 : i32
    return %c0_i32, %c0_i32_0 : i32, i32
  }
  func.func @transform_6(%arg0: i32) -> (i32, i32) {
    %c0_i32 = arith.constant 0 : i32
    %c0_i32_0 = arith.constant 0 : i32
    %c0_i32_1 = arith.constant 0 : i32
    return %c0_i32, %c0_i32_0 : i32, i32
  }
  func.func @transform_7(%arg0: i32) -> (i32, i32) {
    %c0_i32 = arith.constant 0 : i32
    %c0_i32_0 = arith.constant 0 : i32
    %c0_i32_1 = arith.constant 0 : i32
    return %c0_i32, %c0_i32_0 : i32, i32
  }
  func.func @transform_8(%arg0: i32) -> (i32, i32) {
    %c0_i32 = arith.constant 0 : i32
    %c0_i32_0 = arith.constant 0 : i32
    %c0_i32_1 = arith.constant 0 : i32
    return %c0_i32, %c0_i32_0 : i32, i32
  }
  func.func @transform_9(%arg0: i32) -> (i32, i32) {
    %c0_i32 = arith.constant 0 : i32
    %c0_i32_0 = arith.constant 0 : i32
    return %arg0, %c0_i32 : i32, i32
  }
}

</mosaic_0001>

<llo_original>
// kernel: tpu_custom_call.1
$region0: #{tpu_custom_call.1}
  #allocation0 [shape = 'u32[]', space=smem, size = 0x4, offset = 0x4, fixed_abs, tag = 'smem constant byte address 0x4 - core index']
  #allocation1 [shape = 'u32[144,128]{1,0:T(1,128)}', space=vmem, size = 0x12000, scoped, tag = 'internal scratch']
  %s0 = inlined_call_operand.vmem [shape: f32[32,16], index: 0, kind: input, shape index: {}]
  %s1 = inlined_call_operand.vmem [shape: f32[16,128], index: 1, kind: input, shape index: {}]
  %s2 = inlined_call_operand.vmem [shape: f32[1,128], index: 2, kind: input, shape index: {}]
  %s3 = inlined_call_operand.vmem [shape: f32[128,128], index: 3, kind: input, shape index: {}]
  %s4 = inlined_call_operand.vmem [shape: f32[1,128], index: 4, kind: input, shape index: {}]
  %s5 = inlined_call_operand.hbm [shape: f32[128,128], index: 5, kind: input, shape index: {}]
  %s6 = inlined_call_operand.vmem [shape: f32[1,128], index: 6, kind: input, shape index: {}]
  %s7 = inlined_call_operand.vmem [shape: f32[128,8], index: 7, kind: input, shape index: {}]
  %s8 = inlined_call_operand.vmem [shape: f32[1,8], index: 8, kind: input, shape index: {}]
  %s9 = inlined_call_operand.vmem [shape: f32[32,8], index: 9, kind: output, shape index: {}]
  %s10 = sld [smem:[#allocation0]]
  $region50: #{tpu_custom_call.1} parent=0
    _
  %s12 = ssub.s32 1, %s10
  %s13 = scalar_select 0, %s12, %s10
  $region1: #{tpu_custom_call.1} parent=0
    #allocation2 [shape = 'u8[65536]{0}', space=vmem, size = 0x10000, scoped, tag = 'input window, operand 5, single buffered']
    #allocation3 [shape = 's32[1]{0}', space=sflag, size = 0x4, scoped, tag = 'scoped memory for tpu_custom_call.1']
    %14 = vsyncpa [#allocation3], 0
    // Predicated region
    $region2: #{tpu_custom_call.1} parent=1 // pred_check
      _
    $region3: #{tpu_custom_call.1} parent=1 // pred_check_branch
      %16 = sbr.rel (0) target = $region5
    $region4: #{tpu_custom_call.1} parent=1 // pred_region
      _
    $region5: #{tpu_custom_call.1} parent=1 // pred_fallthru
      _
    // Predicated region
    $region6: #{tpu_custom_call.1} parent=1 // pred_check
      _
    $region7: #{tpu_custom_call.1} parent=1 // pred_check_branch
      %18 = sbr.rel (0) target = $region9
    $region8: #{tpu_custom_call.1} parent=1 // pred_region
      _
    $region9: #{tpu_custom_call.1} parent=1 // pred_fallthru
      _
    // Predicated region
    $region10: #{tpu_custom_call.1} parent=1 // pred_check
      _
    $region11: #{tpu_custom_call.1} parent=1 // pred_check_branch
      %20 = sbr.rel (0) target = $region13
    $region12: #{tpu_custom_call.1} parent=1 // pred_region
      _
    $region13: #{tpu_custom_call.1} parent=1 // pred_fallthru
      _
    // Predicated region
    $region14: #{tpu_custom_call.1} parent=1 // pred_check
      _
    $region15: #{tpu_custom_call.1} parent=1 // pred_check_branch
      %22 = sbr.rel (0) target = $region17
    $region16: #{tpu_custom_call.1} parent=1 // pred_region
      _
    $region17: #{tpu_custom_call.1} parent=1 // pred_fallthru
      _
    // Predicated region
    $region18: #{tpu_custom_call.1} parent=1 // pred_check
      _
    $region19: #{tpu_custom_call.1} parent=1 // pred_check_branch
      %24 = sbr.rel (0) target = $region21
    $region20: #{tpu_custom_call.1} parent=1 // pred_region
      _
    $region21: #{tpu_custom_call.1} parent=1 // pred_fallthru
      _
    // Predicated region
    $region22: #{tpu_custom_call.1} parent=1 // pred_check
      _
    $region23: #{tpu_custom_call.1} parent=1 // pred_check_branch
      %26 = sbr.rel (0) target = $region25
    $region24: #{tpu_custom_call.1} parent=1 // pred_region
      %s28 = ssub.s32 2048, 2048
      %29 = vsyncadd [#allocation3], %s28
      %s30 = sshll.u32 [#allocation2], 4
      %s31 = int_to_ptr.vmem [resolvable:$true] %s30
      %36 = dma.hbm_to_vmem [thread:$0]  %s5, 2048, %s31, [#allocation3], 128, 128, 8
    $region25: #{tpu_custom_call.1} parent=1 // pred_fallthru
      _
    // Predicated region
    $region26: #{tpu_custom_call.1} parent=1 // pred_check
      _
    $region27: #{tpu_custom_call.1} parent=1 // pred_check_branch
      %38 = sbr.rel (0) target = $region29
    $region28: #{tpu_custom_call.1} parent=1 // pred_region
      _
    $region29: #{tpu_custom_call.1} parent=1 // pred_fallthru
      _
    // Predicated region
    $region30: #{tpu_custom_call.1} parent=1 // pred_check
      _
    $region31: #{tpu_custom_call.1} parent=1 // pred_check_branch
      %40 = sbr.rel (0) target = $region33
    $region32: #{tpu_custom_call.1} parent=1 // pred_region
      _
    $region33: #{tpu_custom_call.1} parent=1 // pred_fallthru
      _
    // Predicated region
    $region34: #{tpu_custom_call.1} parent=1 // pred_check
      _
    $region35: #{tpu_custom_call.1} parent=1 // pred_check_branch
      %42 = sbr.rel (0) target = $region37
    $region36: #{tpu_custom_call.1} parent=1 // pred_region
      _
    $region37: #{tpu_custom_call.1} parent=1 // pred_fallthru
      _
    // Predicated region
    $region38: #{tpu_custom_call.1} parent=1 // pred_check
      _
    $region39: #{tpu_custom_call.1} parent=1 // pred_check_branch
      %44 = sbr.rel (0) target = $region41
    $region40: #{tpu_custom_call.1} parent=1 // pred_region
      %45 = dma.done [#allocation3], 2048
    $region41: #{tpu_custom_call.1} parent=1 // pred_fallthru
      _
    %v46 = vld [vmem:[%s0] sm:$0xff]
    %v47 = vld [vmem:[%s0 + $0x8] sm:$0xff]
    %v48 = vld [vmem:[%s0 + $0x10] sm:$0xff]
    %v49 = vld [vmem:[%s0 + $0x18] sm:$0xff]
    %v50 = vld [vmem:[%s1] sm:$0xff]
    %v51 = vld [vmem:[%s1 + $0x8] sm:$0xff]
    %v52 = vld [vmem:[%s2] sm:$0x1]
    %v54 = vlaneseq
    %v55 = vshrl.u32 %v54, 7
    %v56 = vsub.s32 0, %v55
    %v57 = vrot.slane %v52, %v56
    %vm59 = vcmask 130048
    %v61 = vsel %vm59, %v46, 0
    %v64 = vsel %vm59, %v47, 0
    %v67 = vsel %vm59, %v48, 0
    %v70 = vsel %vm59, %v49, 0
    %72 = vmatprep.subr.mxu0 0.0
    %73 = vmatpush1.msra.mxu0 0.0
    %74 = vmatprep.subr.mxu0 0.0
    %75 = vmatpush1.msra.mxu0 0.0
    %76 = vmatprep.subr.mxu0 0.0
    %77 = vmatpush1.msra.mxu0 0.0
    %78 = vmatprep.subr.mxu0 0.0
    %79 = vmatpush1.msra.mxu0 0.0
    %80 = vmatprep.subr.mxu0 0.0
    %81 = vmatpush1.msra.mxu0 0.0
    %82 = vmatprep.subr.mxu0 0.0
    %83 = vmatpush1.msra.mxu0 0.0
    %84 = vmatprep.subr.mxu0 0.0
    %85 = vmatpush1.msra.mxu0 0.0
    %86 = vmatprep.subr.mxu0 0.0
    %87 = vmatpush1.msra.mxu0 0.0
    %88 = vmatprep.subr.mxu0 0.0
    %89 = vmatpush1.msra.mxu0 0.0
    %90 = vmatprep.subr.mxu0 0.0
    %91 = vmatpush1.msra.mxu0 0.0
    %92 = vmatprep.subr.mxu0 0.0
    %93 = vmatpush1.msra.mxu0 0.0
    %94 = vmatprep.subr.mxu0 0.0
    %95 = vmatpush1.msra.mxu0 0.0
    %96 = vmatprep.subr.mxu0 0.0
    %97 = vmatpush1.msra.mxu0 0.0
    %98 = vmatprep.subr.mxu0 0.0
    %99 = vmatpush1.msra.mxu0 0.0
    %100 = vmatprep.subr.mxu0 0.0
    %101 = vmatpush1.msra.mxu0 %v51
    %102 = vmatprep.subr.mxu0 0.0
    %103 = vmatpush1.msra.mxu0 %v50
    %104 = vmatprep.subr.mxu0 0.0
    %105 = vmatpush2.msra.mxu0 0.0
    %106 = vmatprep.subr.mxu0 0.0
    %107 = vmatpush2.msra.mxu0 0.0
    %108 = vmatprep.subr.mxu0 0.0
    %109 = vmatpush2.msra.mxu0 0.0
    %110 = vmatprep.subr.mxu0 0.0
    %111 = vmatpush2.msra.mxu0 0.0
    %112 = vmatprep.subr.mxu0 0.0
    %113 = vmatpush2.msra.mxu0 0.0
    %114 = vmatprep.subr.mxu0 0.0
    %115 = vmatpush2.msra.mxu0 0.0
    %116 = vmatprep.subr.mxu0 0.0
    %117 = vmatpush2.msra.mxu0 0.0
    %118 = vmatprep.subr.mxu0 0.0
    %119 = vmatpush2.msra.mxu0 0.0
    %120 = vmatprep.subr.mxu0 0.0
    %121 = vmatpush2.msra.mxu0 0.0
    %122 = vmatprep.subr.mxu0 0.0
    %123 = vmatpush2.msra.mxu0 0.0
    %124 = vmatprep.subr.mxu0 0.0
    %125 = vmatpush2.msra.mxu0 0.0
    %126 = vmatprep.subr.mxu0 0.0
    %127 = vmatpush2.msra.mxu0 0.0
    %128 = vmatprep.subr.mxu0 0.0
    %129 = vmatpush2.msra.mxu0 0.0
    %130 = vmatprep.subr.mxu0 0.0
    %131 = vmatpush2.msra.mxu0 0.0
    %132 = vmatprep.subr.mxu0 0.0
    %133 = vmatpush2.msra.mxu0 0.0
    %134 = vmatprep.subr.mxu0 0.0
    %135 = vmatpush2.msra.mxu0 0.0
    %136 = vmatprep.mubr.f32.mxu0 0.0
    %137 = vmatmul.mubr.f32.gmra.mxu0 %v61
    %v138 = vpop.f32.mrf.mxu0
    %v139 = vadd.f32 %v57, %v138
    %v140 = vpop.f32.mrf.mxu0
    %141 = vmatprep.mubr.f32.mxu0 0.0
    %142 = vmatmul.mubr.f32.gmra.mxu0 %v64
    %v143 = vpop.f32.mrf.mxu0
    %v144 = vadd.f32 %v57, %v143
    %v145 = vpop.f32.mrf.mxu0
    %146 = vmatprep.mubr.f32.mxu0 0.0
    %147 = vmatmul.mubr.f32.gmra.mxu0 %v67
    %v148 = vpop.f32.mrf.mxu0
    %v149 = vadd.f32 %v57, %v148
    %v150 = vpop.f32.mrf.mxu0
    %151 = vmatprep.mubr.f32.mxu0 0.0
    %152 = vmatmul.mubr.f32.gmra.mxu0 %v70
    %v153 = vpop.f32.mrf.mxu0
    %v154 = vadd.f32 %v57, %v153
    %v155 = vpop.f32.mrf.mxu0
    %156 = vdwg.mxu0
    %v157 = vmax.f32 %v139, 0.0
    %v158 = vmax.f32 %v144, 0.0
    %v159 = vmax.f32 %v149, 0.0
    %v160 = vmax.f32 %v154, 0.0
    %v161 = vld [vmem:[%s3] sm:$0xff]
    %v162 = vld [vmem:[%s3 + $0x8] sm:$0xff]
    %v163 = vld [vmem:[%s3 + $0x10] sm:$0xff]
    %v164 = vld [vmem:[%s3 + $0x18] sm:$0xff]
    %v165 = vld [vmem:[%s3 + $0x20] sm:$0xff]
    %v166 = vld [vmem:[%s3 + $0x28] sm:$0xff]
    %v167 = vld [vmem:[%s3 + $0x30] sm:$0xff]
    %v168 = vld [vmem:[%s3 + $0x38] sm:$0xff]
    %v169 = vld [vmem:[%s3 + $0x40] sm:$0xff]
    %v170 = vld [vmem:[%s3 + $0x48] sm:$0xff]
    %v171 = vld [vmem:[%s3 + $0x50] sm:$0xff]
    %v172 = vld [vmem:[%s3 + $0x58] sm:$0xff]
    %v173 = vld [vmem:[%s3 + $0x60] sm:$0xff]
    %v174 = vld [vmem:[%s3 + $0x68] sm:$0xff]
    %v175 = vld [vmem:[%s3 + $0x70] sm:$0xff]
    %v176 = vld [vmem:[%s3 + $0x78] sm:$0xff]
    %v177 = vld [vmem:[%s4] sm:$0x1]
    %v179 = vlaneseq
    %v180 = vshrl.u32 %v179, 7
    %v181 = vsub.s32 0, %v180
    %v182 = vrot.slane %v177, %v181
    %184 = vmatprep.subr.mxu0 0.0
    %185 = vmatpush1.msra.mxu0 %v176
    %186 = vmatprep.subr.mxu0 0.0
    %187 = vmatpush1.msra.mxu0 %v175
    %188 = vmatprep.subr.mxu0 0.0
    %189 = vmatpush1.msra.mxu0 %v174
    %190 = vmatprep.subr.mxu0 0.0
    %191 = vmatpush1.msra.mxu0 %v173
    %192 = vmatprep.subr.mxu0 0.0
    %193 = vmatpush1.msra.mxu0 %v172
    %194 = vmatprep.subr.mxu0 0.0
    %195 = vmatpush1.msra.mxu0 %v171
    %196 = vmatprep.subr.mxu0 0.0
    %197 = vmatpush1.msra.mxu0 %v170
    %198 = vmatprep.subr.mxu0 0.0
    %199 = vmatpush1.msra.mxu0 %v169
    %200 = vmatprep.subr.mxu0 0.0
    %201 = vmatpush1.msra.mxu0 %v168
    %202 = vmatprep.subr.mxu0 0.0
    %203 = vmatpush1.msra.mxu0 %v167
    %204 = vmatprep.subr.mxu0 0.0
    %205 = vmatpush1.msra.mxu0 %v166
    %206 = vmatprep.subr.mxu0 0.0
    %207 = vmatpush1.msra.mxu0 %v165
    %208 = vmatprep.subr.mxu0 0.0
    %209 = vmatpush1.msra.mxu0 %v164
    %210 = vmatprep.subr.mxu0 0.0
    %211 = vmatpush1.msra.mxu0 %v163
    %212 = vmatprep.subr.mxu0 0.0
    %213 = vmatpush1.msra.mxu0 %v162
    %214 = vmatprep.subr.mxu0 0.0
    %215 = vmatpush1.msra.mxu0 %v161
    %216 = vmatprep.subr.mxu0 0.0
    %217 = vmatpush2.msra.mxu0 0.0
    %218 = vmatprep.subr.mxu0 0.0
    %219 = vmatpush2.msra.mxu0 0.0
    %220 = vmatprep.subr.mxu0 0.0
    %221 = vmatpush2.msra.mxu0 0.0
    %222 = vmatprep.subr.mxu0 0.0
    %223 = vmatpush2.msra.mxu0 0.0
    %224 = vmatprep.subr.mxu0 0.0
    %225 = vmatpush2.msra.mxu0 0.0
    %226 = vmatprep.subr.mxu0 0.0
    %227 = vmatpush2.msra.mxu0 0.0
    %228 = vmatprep.subr.mxu0 0.0
    %229 = vmatpush2.msra.mxu0 0.0
    %230 = vmatprep.subr.mxu0 0.0
    %231 = vmatpush2.msra.mxu0 0.0
    %232 = vmatprep.subr.mxu0 0.0
    %233 = vmatpush2.msra.mxu0 0.0
    %234 = vmatprep.subr.mxu0 0.0
    %235 = vmatpush2.msra.mxu0 0.0
    %236 = vmatprep.subr.mxu0 0.0
    %237 = vmatpush2.msra.mxu0 0.0
    %238 = vmatprep.subr.mxu0 0.0
    %239 = vmatpush2.msra.mxu0 0.0
    %240 = vmatprep.subr.mxu0 0.0
    %241 = vmatpush2.msra.mxu0 0.0
    %242 = vmatprep.subr.mxu0 0.0
    %243 = vmatpush2.msra.mxu0 0.0
    %244 = vmatprep.subr.mxu0 0.0
    %245 = vmatpush2.msra.mxu0 0.0
    %246 = vmatprep.subr.mxu0 0.0
    %247 = vmatpush2.msra.mxu0 0.0
    %248 = vmatprep.mubr.f32.mxu0 0.0
    %249 = vmatmul.mubr.f32.gmra.mxu0 %v157
    %v250 = vpop.f32.mrf.mxu0
    %v251 = vadd.f32 %v182, %v250
    %v252 = vpop.f32.mrf.mxu0
    %253 = vmatprep.mubr.f32.mxu0 0.0
    %254 = vmatmul.mubr.f32.gmra.mxu0 %v158
    %v255 = vpop.f32.mrf.mxu0
    %v256 = vadd.f32 %v182, %v255
    %v257 = vpop.f32.mrf.mxu0
    %258 = vmatprep.mubr.f32.mxu0 0.0
    %259 = vmatmul.mubr.f32.gmra.mxu0 %v159
    %v260 = vpop.f32.mrf.mxu0
    %v261 = vadd.f32 %v182, %v260
    %v262 = vpop.f32.mrf.mxu0
    %263 = vmatprep.mubr.f32.mxu0 0.0
    %264 = vmatmul.mubr.f32.gmra.mxu0 %v160
    %v265 = vpop.f32.mrf.mxu0
    %v266 = vadd.f32 %v182, %v265
    %v267 = vpop.f32.mrf.mxu0
    %268 = vdwg.mxu0
    %v269 = vmax.f32 %v251, 0.0
    %v270 = vmax.f32 %v256, 0.0
    %v271 = vmax.f32 %v261, 0.0
    %v272 = vmax.f32 %v266, 0.0
    %v273 = vld [vmem:[#allocation2] sm:$0xff]
    %v274 = vld [vmem:[#allocation2 + $0x8] sm:$0xff]
    %v275 = vld [vmem:[#allocation2 + $0x10] sm:$0xff]
    %v276 = vld [vmem:[#allocation2 + $0x18] sm:$0xff]
    %v277 = vld [vmem:[#allocation2 + $0x20] sm:$0xff]
    %v278 = vld [vmem:[#allocation2 + $0x28] sm:$0xff]
    %v279 = vld [vmem:[#allocation2 + $0x30] sm:$0xff]
    %v280 = vld [vmem:[#allocation2 + $0x38] sm:$0xff]
    %v281 = vld [vmem:[#allocation2 + $0x40] sm:$0xff]
    %v282 = vld [vmem:[#allocation2 + $0x48] sm:$0xff]
    %v283 = vld [vmem:[#allocation2 + $0x50] sm:$0xff]
    %v284 = vld [vmem:[#allocation2 + $0x58] sm:$0xff]
    %v285 = vld [vmem:[#allocation2 + $0x60] sm:$0xff]
    %v286 = vld [vmem:[#allocation2 + $0x68] sm:$0xff]
    %v287 = vld [vmem:[#allocation2 + $0x70] sm:$0xff]
    %v288 = vld [vmem:[#allocation2 + $0x78] sm:$0xff]
    %v289 = vld [vmem:[%s6] sm:$0x1]
    %v291 = vlaneseq
    %v292 = vshrl.u32 %v291, 7
    %v293 = vsub.s32 0, %v292
    %v294 = vrot.slane %v289, %v293
    %296 = vmatprep.subr.mxu0 0.0
    %297 = vmatpush1.msra.mxu0 %v288
    %298 = vmatprep.subr.mxu0 0.0
    %299 = vmatpush1.msra.mxu0 %v287
    %300 = vmatprep.subr.mxu0 0.0
    %301 = vmatpush1.msra.mxu0 %v286
    %302 = vmatprep.subr.mxu0 0.0
    %303 = vmatpush1.msra.mxu0 %v285
    %304 = vmatprep.subr.mxu0 0.0
    %305 = vmatpush1.msra.mxu0 %v284
    %306 = vmatprep.subr.mxu0 0.0
    %307 = vmatpush1.msra.mxu0 %v283
    %308 = vmatprep.subr.mxu0 0.0
    %309 = vmatpush1.msra.mxu0 %v282
    %310 = vmatprep.subr.mxu0 0.0
    %311 = vmatpush1.msra.mxu0 %v281
    %312 = vmatprep.subr.mxu0 0.0
    %313 = vmatpush1.msra.mxu0 %v280
    %314 = vmatprep.subr.mxu0 0.0
    %315 = vmatpush1.msra.mxu0 %v279
    %316 = vmatprep.subr.mxu0 0.0
    %317 = vmatpush1.msra.mxu0 %v278
    %318 = vmatprep.subr.mxu0 0.0
    %319 = vmatpush1.msra.mxu0 %v277
    %320 = vmatprep.subr.mxu0 0.0
    %321 = vmatpush1.msra.mxu0 %v276
    %322 = vmatprep.subr.mxu0 0.0
    %323 = vmatpush1.msra.mxu0 %v275
    %324 = vmatprep.subr.mxu0 0.0
    %325 = vmatpush1.msra.mxu0 %v274
    %326 = vmatprep.subr.mxu0 0.0
    %327 = vmatpush1.msra.mxu0 %v273
    %328 = vmatprep.subr.mxu0 0.0
    %329 = vmatpush2.msra.mxu0 0.0
    %330 = vmatprep.subr.mxu0 0.0
    %331 = vmatpush2.msra.mxu0 0.0
    %332 = vmatprep.subr.mxu0 0.0
    %333 = vmatpush2.msra.mxu0 0.0
    %334 = vmatprep.subr.mxu0 0.0
    %335 = vmatpush2.msra.mxu0 0.0
    %336 = vmatprep.subr.mxu0 0.0
    %337 = vmatpush2.msra.mxu0 0.0
    %338 = vmatprep.subr.mxu0 0.0
    %339 = vmatpush2.msra.mxu0 0.0
    %340 = vmatprep.subr.mxu0 0.0
    %341 = vmatpush2.msra.mxu0 0.0
    %342 = vmatprep.subr.mxu0 0.0
    %343 = vmatpush2.msra.mxu0 0.0
    %344 = vmatprep.subr.mxu0 0.0
    %345 = vmatpush2.msra.mxu0 0.0
    %346 = vmatprep.subr.mxu0 0.0
    %347 = vmatpush2.msra.mxu0 0.0
    %348 = vmatprep.subr.mxu0 0.0
    %349 = vmatpush2.msra.mxu0 0.0
    %350 = vmatprep.subr.mxu0 0.0
    %351 = vmatpush2.msra.mxu0 0.0
    %352 = vmatprep.subr.mxu0 0.0
    %353 = vmatpush2.msra.mxu0 0.0
    %354 = vmatprep.subr.mxu0 0.0
    %355 = vmatpush2.msra.mxu0 0.0
    %356 = vmatprep.subr.mxu0 0.0
    %357 = vmatpush2.msra.mxu0 0.0
    %358 = vmatprep.subr.mxu0 0.0
    %359 = vmatpush2.msra.mxu0 0.0
    %360 = vmatprep.mubr.f32.mxu0 0.0
    %361 = vmatmul.mubr.f32.gmra.mxu0 %v269
    %v362 = vpop.f32.mrf.mxu0
    %v363 = vadd.f32 %v294, %v362
    %v364 = vpop.f32.mrf.mxu0
    %365 = vmatprep.mubr.f32.mxu0 0.0
    %366 = vmatmul.mubr.f32.gmra.mxu0 %v270
    %v367 = vpop.f32.mrf.mxu0
    %v368 = vadd.f32 %v294, %v367
    %v369 = vpop.f32.mrf.mxu0
    %370 = vmatprep.mubr.f32.mxu0 0.0
    %371 = vmatmul.mubr.f32.gmra.mxu0 %v271
    %v372 = vpop.f32.mrf.mxu0
    %v373 = vadd.f32 %v294, %v372
    %v374 = vpop.f32.mrf.mxu0
    %375 = vmatprep.mubr.f32.mxu0 0.0
    %376 = vmatmul.mubr.f32.gmra.mxu0 %v272
    %v377 = vpop.f32.mrf.mxu0
    %v378 = vadd.f32 %v294, %v377
    %v379 = vpop.f32.mrf.mxu0
    %380 = vdwg.mxu0
    %v381 = vmax.f32 %v363, 0.0
    %v382 = vmax.f32 %v368, 0.0
    %v383 = vmax.f32 %v373, 0.0
    %v384 = vmax.f32 %v378, 0.0
    %v385 = vld [vmem:[%s7] sm:$0xff]
    %v386 = vld [vmem:[%s7 + $0x8] sm:$0xff]
    %v387 = vld [vmem:[%s7 + $0x10] sm:$0xff]
    %v388 = vld [vmem:[%s7 + $0x18] sm:$0xff]
    %v389 = vld [vmem:[%s7 + $0x20] sm:$0xff]
    %v390 = vld [vmem:[%s7 + $0x28] sm:$0xff]
    %v391 = vld [vmem:[%s7 + $0x30] sm:$0xff]
    %v392 = vld [vmem:[%s7 + $0x38] sm:$0xff]
    %v393 = vld [vmem:[%s7 + $0x40] sm:$0xff]
    %v394 = vld [vmem:[%s7 + $0x48] sm:$0xff]
    %v395 = vld [vmem:[%s7 + $0x50] sm:$0xff]
    %v396 = vld [vmem:[%s7 + $0x58] sm:$0xff]
    %v397 = vld [vmem:[%s7 + $0x60] sm:$0xff]
    %v398 = vld [vmem:[%s7 + $0x68] sm:$0xff]
    %v399 = vld [vmem:[%s7 + $0x70] sm:$0xff]
    %v400 = vld [vmem:[%s7 + $0x78] sm:$0xff]
    %v401 = vld [vmem:[%s8] sm:$0x1]
    %v403 = vlaneseq
    %v404 = vshrl.u32 %v403, 7
    %v405 = vsub.s32 0, %v404
    %v406 = vrot.slane %v401, %v405
    %408 = vmatprep.subr.mxu0 0.0
    %409 = vmatpush1.msra.mxu0 %v400
    %410 = vmatprep.subr.mxu0 0.0
    %411 = vmatpush1.msra.mxu0 %v399
    %412 = vmatprep.subr.mxu0 0.0
    %413 = vmatpush1.msra.mxu0 %v398
    %414 = vmatprep.subr.mxu0 0.0
    %415 = vmatpush1.msra.mxu0 %v397
    %416 = vmatprep.subr.mxu0 0.0
    %417 = vmatpush1.msra.mxu0 %v396
    %418 = vmatprep.subr.mxu0 0.0
    %419 = vmatpush1.msra.mxu0 %v395
    %420 = vmatprep.subr.mxu0 0.0
    %421 = vmatpush1.msra.mxu0 %v394
    %422 = vmatprep.subr.mxu0 0.0
    %423 = vmatpush1.msra.mxu0 %v393
    %424 = vmatprep.subr.mxu0 0.0
    %425 = vmatpush1.msra.mxu0 %v392
    %426 = vmatprep.subr.mxu0 0.0
    %427 = vmatpush1.msra.mxu0 %v391
    %428 = vmatprep.subr.mxu0 0.0
    %429 = vmatpush1.msra.mxu0 %v390
    %430 = vmatprep.subr.mxu0 0.0
    %431 = vmatpush1.msra.mxu0 %v389
    %432 = vmatprep.subr.mxu0 0.0
    %433 = vmatpush1.msra.mxu0 %v388
    %434 = vmatprep.subr.mxu0 0.0
    %435 = vmatpush1.msra.mxu0 %v387
    %436 = vmatprep.subr.mxu0 0.0
    %437 = vmatpush1.msra.mxu0 %v386
    %438 = vmatprep.subr.mxu0 0.0
    %439 = vmatpush1.msra.mxu0 %v385
    %440 = vmatprep.subr.mxu0 0.0
    %441 = vmatpush2.msra.mxu0 0.0
    %442 = vmatprep.subr.mxu0 0.0
    %443 = vmatpush2.msra.mxu0 0.0
    %444 = vmatprep.subr.mxu0 0.0
    %445 = vmatpush2.msra.mxu0 0.0
    %446 = vmatprep.subr.mxu0 0.0
    %447 = vmatpush2.msra.mxu0 0.0
    %448 = vmatprep.subr.mxu0 0.0
    %449 = vmatpush2.msra.mxu0 0.0
    %450 = vmatprep.subr.mxu0 0.0
    %451 = vmatpush2.msra.mxu0 0.0
    %452 = vmatprep.subr.mxu0 0.0
    %453 = vmatpush2.msra.mxu0 0.0
    %454 = vmatprep.subr.mxu0 0.0
    %455 = vmatpush2.msra.mxu0 0.0
    %456 = vmatprep.subr.mxu0 0.0
    %457 = vmatpush2.msra.mxu0 0.0
    %458 = vmatprep.subr.mxu0 0.0
    %459 = vmatpush2.msra.mxu0 0.0
    %460 = vmatprep.subr.mxu0 0.0
    %461 = vmatpush2.msra.mxu0 0.0
    %462 = vmatprep.subr.mxu0 0.0
    %463 = vmatpush2.msra.mxu0 0.0
    %464 = vmatprep.subr.mxu0 0.0
    %465 = vmatpush2.msra.mxu0 0.0
    %466 = vmatprep.subr.mxu0 0.0
    %467 = vmatpush2.msra.mxu0 0.0
    %468 = vmatprep.subr.mxu0 0.0
    %469 = vmatpush2.msra.mxu0 0.0
    %470 = vmatprep.subr.mxu0 0.0
    %471 = vmatpush2.msra.mxu0 0.0
    %472 = vmatprep.mubr.f32.mxu0 0.0
    %473 = vmatmul.mubr.f32.gmra.mxu0 %v381
    %v474 = vpop.f32.mrf.mxu0
    %v475 = vadd.f32 %v406, %v474
    %v476 = vpop.f32.mrf.mxu0
    %477 = vmatprep.mubr.f32.mxu0 0.0
    %478 = vmatmul.mubr.f32.gmra.mxu0 %v382
    %v479 = vpop.f32.mrf.mxu0
    %v480 = vadd.f32 %v406, %v479
    %v481 = vpop.f32.mrf.mxu0
    %482 = vmatprep.mubr.f32.mxu0 0.0
    %483 = vmatmul.mubr.f32.gmra.mxu0 %v383
    %v484 = vpop.f32.mrf.mxu0
    %v485 = vadd.f32 %v406, %v484
    %v486 = vpop.f32.mrf.mxu0
    %487 = vmatprep.mubr.f32.mxu0 0.0
    %488 = vmatmul.mubr.f32.gmra.mxu0 %v384
    %v489 = vpop.f32.mrf.mxu0
    %v490 = vadd.f32 %v406, %v489
    %v491 = vpop.f32.mrf.mxu0
    %492 = vdwg.mxu0
    %vm493 = vcmask 64512
    %494 = vst.msk [vmem:[%s9] sm:$0xff] %vm493, %v475
    %495 = vst.msk [vmem:[%s9 + $0x8] sm:$0xff] %vm493, %v480
    %496 = vst.msk [vmem:[%s9 + $0x10] sm:$0xff] %vm493, %v485
    %497 = vst.msk [vmem:[%s9 + $0x18] sm:$0xff] %vm493, %v490
    // Predicated region
    $region42: #{tpu_custom_call.1} parent=1 // pred_check
      _
    $region43: #{tpu_custom_call.1} parent=1 // pred_check_branch
      %499 = sbr.rel (0) target = $region45
    $region44: #{tpu_custom_call.1} parent=1 // pred_region
      _
    $region45: #{tpu_custom_call.1} parent=1 // pred_fallthru
      _
    // Predicated region
    $region46: #{tpu_custom_call.1} parent=1 // pred_check
      _
    $region47: #{tpu_custom_call.1} parent=1 // pred_check_branch
      %501 = sbr.rel (0) target = $region49
    $region48: #{tpu_custom_call.1} parent=1 // pred_region
      _
    $region49: #{tpu_custom_call.1} parent=1 // pred_fallthru
      _
    %502 = vsyncpa [#allocation3], 1

</llo_original>
